<compile_context>
chip_gen: v6e
topology: v6e:2x2x1
jax: 0.10.0
libtpu: 0.0.40
codegen_flags: <defaults>
</compile_context>

<pallas_src>
import jax
import jax.numpy as jnp
from jax.experimental import pallas as pl
from jax.experimental.pallas import tpu as pltpu


def _feedback_kernel(xd_ref, xo_ref, w1_ref, w2_ref, b_ref, out_ref):
    # xd_ref:  [D, TILE_B]  decoded.T  block (batch on the lane axis)
    # xo_ref:  [D, TILE_B]  original.T block
    # w1_ref:  [F, D]       weight[:, :D]  (resident across grid steps)
    # w2_ref:  [F, D]       weight[:, D:]  (resident across grid steps)
    # b_ref:   [F, 1]       bias           (resident across grid steps)
    # out_ref: [F, TILE_B]  lane-dense output (unmasked vst when TILE_B % 128 == 0)
    acc = jnp.dot(w1_ref[...], xd_ref[...], preferred_element_type=jnp.float32)
    acc = acc + jnp.dot(w2_ref[...], xo_ref[...], preferred_element_type=jnp.float32)
    out_ref[...] = (acc + b_ref[...]).astype(out_ref.dtype)


def feedback_generator(decoded, original, weight, bias, *, tile_b=32768,
                       use_pallas=None):
    """Forward pass of SimpleFeedbackGenerator.

    decoded, original: [B, D] float32
    weight:            [F, 2D] float32 (PyTorch nn.Linear [out_features, in_features])
    bias:              [F]    float32
    returns:           [B, F] float32

    use_pallas: None -> auto (plain XLA for B <= 1024, Pallas otherwise),
                True/False to force a path.
    """
    B, D = decoded.shape
    F, K = weight.shape
    assert K == 2 * D and original.shape == (B, D) and bias.shape == (F,)

    if use_pallas is None:
        use_pallas = B > 1024
    if not use_pallas:
        # Tiny-B: launch/fixed-overhead bound; a custom kernel cannot win.
        return jnp.concatenate([decoded, original], axis=1) @ weight.T + bias

    # Split the weight in the wrapper ([F, D] each, negligible bytes) so the
    # kernel avoids any activation concat.
    w1 = weight[:, :D]
    w2 = weight[:, D:]
    bias2d = bias.reshape(F, 1)

    # Batch lives on the lane (last) axis -> lane-dense output, unmasked stores.
    xd_t = decoded.T                                   # [D, B]
    xo_t = original.T                                  # [D, B]

    # ---- batch tile selection -------------------------------------------
    tb = min(tile_b, B)
    if tb < B:
        # Multi-step grid: tile must be a multiple of 128 (boundary block is
        # clamped by Pallas; no jnp.pad needed).
        assert tb % 128 == 0, "tile_b must be a multiple of 128 when tiling"
    elif B >= 4096:
        # Single large block: split so v7x's two TensorCores each get a step.
        tb = pl.cdiv(pl.cdiv(B, 2), 128) * 128
    # else: tb == B (block extent equals full array dim -> legal even if < 128)

    grid = (pl.cdiv(B, tb),)

    bytes_accessed = (2 * B * D + B * F + F * K + F) * 4
    cost = pl.CostEstimate(flops=2 * B * K * F, transcendentals=0,
                           bytes_accessed=bytes_accessed)

    out_t = pl.pallas_call(
        _feedback_kernel,
        out_shape=jax.ShapeDtypeStruct((F, B), jnp.float32),
        grid=grid,
        in_specs=[
            pl.BlockSpec((D, tb), lambda i: (0, i)),   # decoded.T : streamed over batch
            pl.BlockSpec((D, tb), lambda i: (0, i)),   # original.T: streamed over batch
            pl.BlockSpec((F, D), lambda i: (0, 0)),    # w1: resident across grid
            pl.BlockSpec((F, D), lambda i: (0, 0)),    # w2: resident across grid
            pl.BlockSpec((F, 1), lambda i: (0, 0)),    # bias: resident across grid
        ],
        out_specs=pl.BlockSpec((F, tb), lambda i: (0, i)),
        compiler_params=pltpu.CompilerParams(
            dimension_semantics=("parallel",)),        # shard batch grid over TCs
        cost_estimate=cost,
    )(xd_t, xo_t, w1, w2, bias2d)

    return out_t.T                                     # [B, F]


if __name__ == "__main__":
    key = jax.random.PRNGKey(0)
    k_dec, k_orig, k_w, k_b = jax.random.split(key, 4)

    B, D, FEEDBACK = 8, 10, 3   # concat dim = 20, matching nn.Linear(20, 3)

    decoded = jax.random.normal(k_dec, (B, D), dtype=jnp.float32)
    original = jax.random.normal(k_orig, (B, D), dtype=jnp.float32)

    # PyTorch-style uniform(-1/sqrt(in_features), 1/sqrt(in_features)) init,
    # weight kept in nn.Linear's native [out_features, in_features] layout.
    bound = 1.0 / jnp.sqrt(jnp.float32(2 * D))
    weight = jax.random.uniform(k_w, (FEEDBACK, 2 * D), dtype=jnp.float32,
                                minval=-bound, maxval=bound)
    bias = jax.random.uniform(k_b, (FEEDBACK,), dtype=jnp.float32,
                              minval=-bound, maxval=bound)

    # Force the Pallas path at the tiny test size to exercise the kernel.
    out = feedback_generator(decoded, original, weight, bias, use_pallas=True)
    jax.block_until_ready(out)

    ref = jnp.concatenate([decoded, original], axis=1) @ weight.T + bias
    assert out.shape == (B, FEEDBACK)
    assert jnp.allclose(out, ref, atol=1e-5, rtol=1e-5)

    # Additional small-scale check exercising a multi-step grid with a clamped
    # boundary block (B=300, tb=128 -> 3 steps, last one partial).
    B2 = 300
    k2 = jax.random.split(key, 2)
    dec2 = jax.random.normal(k2[0], (B2, D), dtype=jnp.float32)
    orig2 = jax.random.normal(k2[1], (B2, D), dtype=jnp.float32)
    out2 = feedback_generator(dec2, orig2, weight, bias,
                              tile_b=128, use_pallas=True)
    jax.block_until_ready(out2)
    ref2 = jnp.concatenate([dec2, orig2], axis=1) @ weight.T + bias
    assert out2.shape == (B2, FEEDBACK)
    assert jnp.allclose(out2, ref2, atol=1e-5, rtol=1e-5)

    print("KERNEL_OK")
</pallas_src>

<mosaic_0001>
module attributes {stable_mosaic.version = 11 : i64} {
  func.func @_feedback_kernel(%arg0: i32, %arg1: memref<10x8xf32, #tpu.memory_space<vmem>>, %arg2: memref<10x8xf32, #tpu.memory_space<vmem>>, %arg3: memref<3x10xf32, #tpu.memory_space<vmem>>, %arg4: memref<3x10xf32, #tpu.memory_space<vmem>>, %arg5: memref<3x1xf32, #tpu.memory_space<vmem>>, %arg6: memref<3x8xf32, #tpu.memory_space<vmem>>) attributes {dimension_semantics = [#tpu.dimension_semantics<parallel>], iteration_bounds = array<i64: 1>, scalar_prefetch = 0 : i64, scratch_operands = 0 : i64, tpu.core_type = #tpu.core_type<tc>, window_params = [{transform_indices = @transform_0, window_bounds = array<i64: 10, 8>}, {transform_indices = @transform_1, window_bounds = array<i64: 10, 8>}, {pipeline_mode = #tpu.pipeline_mode<synchronous>, transform_indices = @transform_2, window_bounds = array<i64: 3, 10>}, {pipeline_mode = #tpu.pipeline_mode<synchronous>, transform_indices = @transform_3, window_bounds = array<i64: 3, 10>}, {pipeline_mode = #tpu.pipeline_mode<synchronous>, transform_indices = @transform_4, window_bounds = array<i64: 3, 1>}, {transform_indices = @transform_5, window_bounds = array<i64: 3, 8>}]} {
    %c0 = arith.constant 0 : index
    %c0_0 = arith.constant 0 : index
    %0 = vector.load %arg3[%c0, %c0_0] : memref<3x10xf32, #tpu.memory_space<vmem>>, vector<3x10xf32>
    %c0_1 = arith.constant 0 : index
    %c0_2 = arith.constant 0 : index
    %1 = vector.load %arg1[%c0_1, %c0_2] : memref<10x8xf32, #tpu.memory_space<vmem>>, vector<10x8xf32>
    %cst = arith.constant dense<0.000000e+00> : vector<3x8xf32>
    %2 = tpu.matmul %0, %1, %cst {dimension_numbers = #tpu.dot_dimension_numbers<[1], [0], [0], [1], [0, 0, 1, 1], [], []>} : vector<3x10xf32>, vector<10x8xf32>, vector<3x8xf32> -> vector<3x8xf32>
    %c0_3 = arith.constant 0 : index
    %c0_4 = arith.constant 0 : index
    %3 = vector.load %arg4[%c0_3, %c0_4] : memref<3x10xf32, #tpu.memory_space<vmem>>, vector<3x10xf32>
    %c0_5 = arith.constant 0 : index
    %c0_6 = arith.constant 0 : index
    %4 = vector.load %arg2[%c0_5, %c0_6] : memref<10x8xf32, #tpu.memory_space<vmem>>, vector<10x8xf32>
    %cst_7 = arith.constant dense<0.000000e+00> : vector<3x8xf32>
    %5 = tpu.matmul %3, %4, %cst_7 {dimension_numbers = #tpu.dot_dimension_numbers<[1], [0], [0], [1], [0, 0, 1, 1], [], []>} : vector<3x10xf32>, vector<10x8xf32>, vector<3x8xf32> -> vector<3x8xf32>
    %6 = arith.addf %2, %5 : vector<3x8xf32>
    %c0_8 = arith.constant 0 : index
    %c0_9 = arith.constant 0 : index
    %7 = vector.load %arg5[%c0_8, %c0_9] : memref<3x1xf32, #tpu.memory_space<vmem>>, vector<3x1xf32>
    %8 = vector.broadcast %7 : vector<3x1xf32> to vector<3x8xf32>
    %9 = arith.addf %6, %8 : vector<3x8xf32>
    %c0_10 = arith.constant 0 : index
    %c0_11 = arith.constant 0 : index
    %10 = vector.load %arg6[%c0_10, %c0_11] : memref<3x8xf32, #tpu.memory_space<vmem>>, vector<3x8xf32>
    tpu.vector_store %arg6[%c0_10, %c0_11], %9 {strides = array<i32>} : memref<3x8xf32, #tpu.memory_space<vmem>>, vector<3x8xf32>,
    return
  }
  func.func @transform_0(%arg0: i32) -> (i32, i32) {
    %c0_i32 = arith.constant 0 : i32
    %c0_i32_0 = arith.constant 0 : i32
    return %c0_i32, %arg0 : i32, i32
  }
  func.func @transform_1(%arg0: i32) -> (i32, i32) {
    %c0_i32 = arith.constant 0 : i32
    %c0_i32_0 = arith.constant 0 : i32
    return %c0_i32, %arg0 : i32, i32
  }
  func.func @transform_2(%arg0: i32) -> (i32, i32) {
    %c0_i32 = arith.constant 0 : i32
    %c0_i32_0 = arith.constant 0 : i32
    %c0_i32_1 = arith.constant 0 : i32
    return %c0_i32, %c0_i32_0 : i32, i32
  }
  func.func @transform_3(%arg0: i32) -> (i32, i32) {
    %c0_i32 = arith.constant 0 : i32
    %c0_i32_0 = arith.constant 0 : i32
    %c0_i32_1 = arith.constant 0 : i32
    return %c0_i32, %c0_i32_0 : i32, i32
  }
  func.func @transform_4(%arg0: i32) -> (i32, i32) {
    %c0_i32 = arith.constant 0 : i32
    %c0_i32_0 = arith.constant 0 : i32
    %c0_i32_1 = arith.constant 0 : i32
    return %c0_i32, %c0_i32_0 : i32, i32
  }
  func.func @transform_5(%arg0: i32) -> (i32, i32) {
    %c0_i32 = arith.constant 0 : i32
    %c0_i32_0 = arith.constant 0 : i32
    return %c0_i32, %arg0 : i32, i32
  }
}

</mosaic_0001>

<llo_original>
// kernel: tpu_custom_call.1
$region0: #{tpu_custom_call.1}
  #allocation0 [shape = 'u32[]', space=smem, size = 0x4, offset = 0x4, fixed_abs, tag = 'smem constant byte address 0x4 - core index']
  #allocation1 [shape = 'u32[144,128]{1,0:T(1,128)}', space=vmem, size = 0x12000, scoped, tag = 'internal scratch']
  %s0 = inlined_call_operand.vmem [shape: f32[10,8], index: 0, kind: input, shape index: {}]
  %s1 = inlined_call_operand.vmem [shape: f32[10,8], index: 1, kind: input, shape index: {}]
  %s2 = inlined_call_operand.vmem [shape: f32[3,10], index: 2, kind: input, shape index: {}]
  %s3 = inlined_call_operand.vmem [shape: f32[3,10], index: 3, kind: input, shape index: {}]
  %s4 = inlined_call_operand.vmem [shape: f32[3,1], index: 4, kind: input, shape index: {}]
  %s5 = inlined_call_operand.hbm [shape: f32[3,8], index: 5, kind: output, shape index: {}]
  %s6 = sld [smem:[#allocation0]]
  $region30: #{tpu_custom_call.1} parent=0
    _
  %s8 = ssub.s32 1, %s6
  %s9 = scalar_select 0, %s8, %s6
  $region1: #{tpu_custom_call.1} parent=0
    #allocation2 [shape = 'u8[2048]{0}', space=vmem, size = 0x800, scoped, tag = 'output window, operand 0, single buffered']
    #allocation3 [shape = 's32[1]{0}', space=sflag, size = 0x4, scoped, tag = 'scoped memory for tpu_custom_call.1']
    %10 = vsyncpa [#allocation3], 0
    // Predicated region
    $region2: #{tpu_custom_call.1} parent=1 // pred_check
      _
    $region3: #{tpu_custom_call.1} parent=1 // pred_check_branch
      %12 = sbr.rel (0) target = $region5
    $region4: #{tpu_custom_call.1} parent=1 // pred_region
      _
    $region5: #{tpu_custom_call.1} parent=1 // pred_fallthru
      _
    // Predicated region
    $region6: #{tpu_custom_call.1} parent=1 // pred_check
      _
    $region7: #{tpu_custom_call.1} parent=1 // pred_check_branch
      %14 = sbr.rel (0) target = $region9
    $region8: #{tpu_custom_call.1} parent=1 // pred_region
      _
    $region9: #{tpu_custom_call.1} parent=1 // pred_fallthru
      _
    // Predicated region
    $region10: #{tpu_custom_call.1} parent=1 // pred_check
      _
    $region11: #{tpu_custom_call.1} parent=1 // pred_check_branch
      %16 = sbr.rel (0) target = $region13
    $region12: #{tpu_custom_call.1} parent=1 // pred_region
      _
    $region13: #{tpu_custom_call.1} parent=1 // pred_fallthru
      _
    // Predicated region
    $region14: #{tpu_custom_call.1} parent=1 // pred_check
      _
    $region15: #{tpu_custom_call.1} parent=1 // pred_check_branch
      %18 = sbr.rel (0) target = $region17
    $region16: #{tpu_custom_call.1} parent=1 // pred_region
      _
    $region17: #{tpu_custom_call.1} parent=1 // pred_fallthru
      _
    // Predicated region
    $region18: #{tpu_custom_call.1} parent=1 // pred_check
      _
    $region19: #{tpu_custom_call.1} parent=1 // pred_check_branch
      %20 = sbr.rel (0) target = $region21
    $region20: #{tpu_custom_call.1} parent=1 // pred_region
      _
    $region21: #{tpu_custom_call.1} parent=1 // pred_fallthru
      _
    %v21 = vld [vmem:[%s2] sm:$0x7]
    %v22 = vld [vmem:[%s0] sm:$0xff]
    %v23 = vld [vmem:[%s0 + $0x8] sm:$0x3]
    %v24 = vld [vmem:[%s3] sm:$0x7]
    %v25 = vld [vmem:[%s1] sm:$0xff]
    %v26 = vld [vmem:[%s1 + $0x8] sm:$0x3]
    %vm27 = vcmask 80896
    %v29 = vsel %vm27, %v24, 0
    %vm31 = vcmask 1041408
    %v33 = vsel %vm31, %v26, 0
    %35 = vmatprep.subr.mxu0 0.0
    %36 = vmatpush1.msra.mxu0 0.0
    %37 = vmatprep.subr.mxu0 0.0
    %38 = vmatpush1.msra.mxu0 0.0
    %39 = vmatprep.subr.mxu0 0.0
    %40 = vmatpush1.msra.mxu0 0.0
    %41 = vmatprep.subr.mxu0 0.0
    %42 = vmatpush1.msra.mxu0 0.0
    %43 = vmatprep.subr.mxu0 0.0
    %44 = vmatpush1.msra.mxu0 0.0
    %45 = vmatprep.subr.mxu0 0.0
    %46 = vmatpush1.msra.mxu0 0.0
    %47 = vmatprep.subr.mxu0 0.0
    %48 = vmatpush1.msra.mxu0 0.0
    %49 = vmatprep.subr.mxu0 0.0
    %50 = vmatpush1.msra.mxu0 0.0
    %51 = vmatprep.subr.mxu0 0.0
    %52 = vmatpush1.msra.mxu0 0.0
    %53 = vmatprep.subr.mxu0 0.0
    %54 = vmatpush1.msra.mxu0 0.0
    %55 = vmatprep.subr.mxu0 0.0
    %56 = vmatpush1.msra.mxu0 0.0
    %57 = vmatprep.subr.mxu0 0.0
    %58 = vmatpush1.msra.mxu0 0.0
    %59 = vmatprep.subr.mxu0 0.0
    %60 = vmatpush1.msra.mxu0 0.0
    %61 = vmatprep.subr.mxu0 0.0
    %62 = vmatpush1.msra.mxu0 0.0
    %63 = vmatprep.subr.mxu0 0.0
    %64 = vmatpush1.msra.mxu0 %v33
    %65 = vmatprep.subr.mxu0 0.0
    %66 = vmatpush1.msra.mxu0 %v25
    %67 = vmatprep.subr.mxu0 0.0
    %68 = vmatpush2.msra.mxu0 0.0
    %69 = vmatprep.subr.mxu0 0.0
    %70 = vmatpush2.msra.mxu0 0.0
    %71 = vmatprep.subr.mxu0 0.0
    %72 = vmatpush2.msra.mxu0 0.0
    %73 = vmatprep.subr.mxu0 0.0
    %74 = vmatpush2.msra.mxu0 0.0
    %75 = vmatprep.subr.mxu0 0.0
    %76 = vmatpush2.msra.mxu0 0.0
    %77 = vmatprep.subr.mxu0 0.0
    %78 = vmatpush2.msra.mxu0 0.0
    %79 = vmatprep.subr.mxu0 0.0
    %80 = vmatpush2.msra.mxu0 0.0
    %81 = vmatprep.subr.mxu0 0.0
    %82 = vmatpush2.msra.mxu0 0.0
    %83 = vmatprep.subr.mxu0 0.0
    %84 = vmatpush2.msra.mxu0 0.0
    %85 = vmatprep.subr.mxu0 0.0
    %86 = vmatpush2.msra.mxu0 0.0
    %87 = vmatprep.subr.mxu0 0.0
    %88 = vmatpush2.msra.mxu0 0.0
    %89 = vmatprep.subr.mxu0 0.0
    %90 = vmatpush2.msra.mxu0 0.0
    %91 = vmatprep.subr.mxu0 0.0
    %92 = vmatpush2.msra.mxu0 0.0
    %93 = vmatprep.subr.mxu0 0.0
    %94 = vmatpush2.msra.mxu0 0.0
    %95 = vmatprep.subr.mxu0 0.0
    %96 = vmatpush2.msra.mxu0 0.0
    %97 = vmatprep.subr.mxu0 0.0
    %98 = vmatpush2.msra.mxu0 0.0
    %99 = vmatprep.mubr.f32.mxu0 0.0
    %100 = vmatmul.mubr.f32.gmra.mxu0 %v29
    %v101 = vpop.f32.mrf.mxu0
    %v102 = vadd.f32 0.0, %v101
    %v103 = vpop.f32.mrf.mxu0
    %104 = vdwg.mxu0
    %v106 = vsel %vm27, %v21, 0
    %v109 = vsel %vm31, %v23, 0
    %111 = vmatprep.subr.mxu0 0.0
    %112 = vmatpush1.msra.mxu0 0.0
    %113 = vmatprep.subr.mxu0 0.0
    %114 = vmatpush1.msra.mxu0 0.0
    %115 = vmatprep.subr.mxu0 0.0
    %116 = vmatpush1.msra.mxu0 0.0
    %117 = vmatprep.subr.mxu0 0.0
    %118 = vmatpush1.msra.mxu0 0.0
    %119 = vmatprep.subr.mxu0 0.0
    %120 = vmatpush1.msra.mxu0 0.0
    %121 = vmatprep.subr.mxu0 0.0
    %122 = vmatpush1.msra.mxu0 0.0
    %123 = vmatprep.subr.mxu0 0.0
    %124 = vmatpush1.msra.mxu0 0.0
    %125 = vmatprep.subr.mxu0 0.0
    %126 = vmatpush1.msra.mxu0 0.0
    %127 = vmatprep.subr.mxu0 0.0
    %128 = vmatpush1.msra.mxu0 0.0
    %129 = vmatprep.subr.mxu0 0.0
    %130 = vmatpush1.msra.mxu0 0.0
    %131 = vmatprep.subr.mxu0 0.0
    %132 = vmatpush1.msra.mxu0 0.0
    %133 = vmatprep.subr.mxu0 0.0
    %134 = vmatpush1.msra.mxu0 0.0
    %135 = vmatprep.subr.mxu0 0.0
    %136 = vmatpush1.msra.mxu0 0.0
    %137 = vmatprep.subr.mxu0 0.0
    %138 = vmatpush1.msra.mxu0 0.0
    %139 = vmatprep.subr.mxu0 0.0
    %140 = vmatpush1.msra.mxu0 %v109
    %141 = vmatprep.subr.mxu0 0.0
    %142 = vmatpush1.msra.mxu0 %v22
    %143 = vmatprep.subr.mxu0 0.0
    %144 = vmatpush2.msra.mxu0 0.0
    %145 = vmatprep.subr.mxu0 0.0
    %146 = vmatpush2.msra.mxu0 0.0
    %147 = vmatprep.subr.mxu0 0.0
    %148 = vmatpush2.msra.mxu0 0.0
    %149 = vmatprep.subr.mxu0 0.0
    %150 = vmatpush2.msra.mxu0 0.0
    %151 = vmatprep.subr.mxu0 0.0
    %152 = vmatpush2.msra.mxu0 0.0
    %153 = vmatprep.subr.mxu0 0.0
    %154 = vmatpush2.msra.mxu0 0.0
    %155 = vmatprep.subr.mxu0 0.0
    %156 = vmatpush2.msra.mxu0 0.0
    %157 = vmatprep.subr.mxu0 0.0
    %158 = vmatpush2.msra.mxu0 0.0
    %159 = vmatprep.subr.mxu0 0.0
    %160 = vmatpush2.msra.mxu0 0.0
    %161 = vmatprep.subr.mxu0 0.0
    %162 = vmatpush2.msra.mxu0 0.0
    %163 = vmatprep.subr.mxu0 0.0
    %164 = vmatpush2.msra.mxu0 0.0
    %165 = vmatprep.subr.mxu0 0.0
    %166 = vmatpush2.msra.mxu0 0.0
    %167 = vmatprep.subr.mxu0 0.0
    %168 = vmatpush2.msra.mxu0 0.0
    %169 = vmatprep.subr.mxu0 0.0
    %170 = vmatpush2.msra.mxu0 0.0
    %171 = vmatprep.subr.mxu0 0.0
    %172 = vmatpush2.msra.mxu0 0.0
    %173 = vmatprep.subr.mxu0 0.0
    %174 = vmatpush2.msra.mxu0 0.0
    %175 = vmatprep.mubr.f32.mxu0 0.0
    %176 = vmatmul.mubr.f32.gmra.mxu0 %v106
    %v177 = vpop.f32.mrf.mxu0
    %v178 = vadd.f32 %v102, %v177
    %v179 = vpop.f32.mrf.mxu0
    %180 = vdwg.mxu0
    %v181 = vld [vmem:[%s4] sm:$0x7]
    %183 = vset.pattern.permute.xlu0 0
    %184 = vperm.xlu0 %183, %v181
    %v185 = vpop.permute.xlu0 %184
    %v187 = vadd.f32 %v178, %v185
    %vm188 = vcmask 59392
    %189 = vst.msk [vmem:[#allocation2] sm:$0x7] %vm188, %v187
    // Predicated region
    $region22: #{tpu_custom_call.1} parent=1 // pred_check
      _
    $region23: #{tpu_custom_call.1} parent=1 // pred_check_branch
      %191 = sbr.rel (0) target = $region25
    $region24: #{tpu_custom_call.1} parent=1 // pred_region
      %s193 = ssub.s32 64, 64
      %194 = vsyncadd [#allocation3], %s193
      %s196 = sshll.u32 [#allocation2], 4
      %s197 = int_to_ptr.vmem [resolvable:$true] %s196
      %199 = dma.vmem_to_hbm [thread:$0]  %s197, 64, %s5, [#allocation3]
    $region25: #{tpu_custom_call.1} parent=1 // pred_fallthru
      _
    // Predicated region
    $region26: #{tpu_custom_call.1} parent=1 // pred_check
      _
    $region27: #{tpu_custom_call.1} parent=1 // pred_check_branch
      %201 = sbr.rel (0) target = $region29
    $region28: #{tpu_custom_call.1} parent=1 // pred_region
      %202 = dma.done [#allocation3], 64
    $region29: #{tpu_custom_call.1} parent=1 // pred_fallthru
      _
    %203 = vsyncpa [#allocation3], 1

</llo_original>
